<compile_context>
chip_gen: v7x
topology: tpu7x:2x2x1
jax: 0.10.0
libtpu: 0.0.40
codegen_flags: <defaults>
</compile_context>

<pallas_src>
import jax
import jax.numpy as jnp
from jax.experimental import pallas as pl
from jax.experimental.pallas import tpu as pltpu

LN_EPS = 1e-5
LANE = 128
SUBLANE = 8
MAX_TILE_B = 2048  # rows per grid step (sweepable); adaptive logic below may shrink it


def _round_up(x, m):
    return (x + m - 1) // m * m


def _cdiv(a, b):
    return -(-a // b)


def _layernorm_f32(h, gamma, beta):
    # Two-pass (centered) variance, eps inside rsqrt -> matches PyTorch nn.LayerNorm.
    mean = jnp.mean(h, axis=-1, keepdims=True)
    centered = h - mean
    var = jnp.mean(centered * centered, axis=-1, keepdims=True)
    return centered * jax.lax.rsqrt(var + LN_EPS) * gamma + beta


def mlp_kernel(x_ref, w1_ref, w2_ref, w3_ref, w4_ref, vec_ref, o_ref):
    d1 = w1_ref.shape[1]   # hidden
    d2 = w2_ref.shape[1]   # hidden
    d3 = w3_ref.shape[1]   # hidden // 2
    out_size = o_ref.shape[1]

    vecs = vec_ref[...]                     # (10, vec_w) f32, VMEM-resident params
    b1, g1, be1 = vecs[0:1, :d1], vecs[1:2, :d1], vecs[2:3, :d1]
    b2, g2, be2 = vecs[3:4, :d2], vecs[4:5, :d2], vecs[5:6, :d2]
    b3, g3, be3 = vecs[6:7, :d3], vecs[7:8, :d3], vecs[8:9, :d3]
    b4 = vecs[9:10, :]                      # padded width; extra cols never stored

    # Layer 1: read f32 x from HBM, cast to bf16 on the VPU (free slot), MXU f32 acc.
    x = x_ref[...].astype(jnp.bfloat16)
    h = jnp.dot(x, w1_ref[...], preferred_element_type=jnp.float32) + b1
    h = jnp.maximum(_layernorm_f32(h, g1, be1), 0.0)

    # Layer 2
    h = jnp.dot(h.astype(jnp.bfloat16), w2_ref[...], preferred_element_type=jnp.float32) + b2
    h = jnp.maximum(_layernorm_f32(h, g2, be2), 0.0)

    # Layer 3
    h = jnp.dot(h.astype(jnp.bfloat16), w3_ref[...], preferred_element_type=jnp.float32) + b3
    h = jnp.maximum(_layernorm_f32(h, g3, be3), 0.0)

    # Output layer: matmul on a 128-wide padded w4 (MXU-friendly), store only the real
    # out_size columns -> narrow, cheap vst.msk instead of 128-lane f32 writeback.
    out = jnp.dot(h.astype(jnp.bfloat16), w4_ref[...], preferred_element_type=jnp.float32) + b4
    o_ref[...] = out[:, :out_size].astype(o_ref.dtype)


def _choose_tiling(batch, max_tile_b):
    """Pick (tile_b, n_tiles, padded_total): even #tiles (>=2 when possible) for v7x."""
    padded_b = _round_up(max(batch, 1), SUBLANE)
    max_tile_b = max(SUBLANE, _round_up(max_tile_b, SUBLANE))
    n_tiles = _cdiv(padded_b, max_tile_b)
    if padded_b > SUBLANE:
        n_tiles = max(n_tiles, 2)          # keep both v7x TensorCores busy
    if n_tiles > 1 and n_tiles % 2 == 1:
        n_tiles += 1                       # even split across the 2 TCs
    tile_b = _round_up(_cdiv(padded_b, n_tiles), SUBLANE)
    return tile_b, n_tiles, tile_b * n_tiles


def enhanced_network_2d(x, params, *, max_tile_b=MAX_TILE_B):
    """Forward pass of EnhancedNetwork2D.

    x: (batch, input_size) or (input_size,) float32
    params: dict with w1..w4 (in, out), b1..b4 (1, out), g1..g3 / be1..be3 (1, feat)
    """
    if x.ndim == 1:
        x = x[None, :]  # mirrors x.unsqueeze(0) in the PyTorch forward
    batch, in_size = x.shape
    hidden = params["w1"].shape[1]
    h2 = params["w3"].shape[1]
    out_size = params["w4"].shape[1]
    vec_w = _round_up(max(hidden, h2, out_size, LANE), LANE)  # lane-dense param rows

    # --- batch tiling (pad rows only; x stays f32, cast happens in-kernel) ---
    tile_b, n_tiles, padded_total = _choose_tiling(batch, max_tile_b)
    if padded_total != batch:
        x = jnp.pad(x, ((0, padded_total - batch), (0, 0)))

    # --- weights: bf16 for the MXU; w4 columns padded to vec_w (compute-only padding) ---
    w1 = params["w1"].astype(jnp.bfloat16)
    w2 = params["w2"].astype(jnp.bfloat16)
    w3 = params["w3"].astype(jnp.bfloat16)
    w4 = jnp.pad(params["w4"], ((0, 0), (0, vec_w - out_size))).astype(jnp.bfloat16)

    # --- pack the ten tiny (1, D) vectors into one (10, vec_w) f32 array ---
    def _row(v):
        return jnp.pad(v, ((0, 0), (0, vec_w - v.shape[1])))

    vecs = jnp.concatenate(
        [_row(params["b1"]), _row(params["g1"]), _row(params["be1"]),
         _row(params["b2"]), _row(params["g2"]), _row(params["be2"]),
         _row(params["b3"]), _row(params["g3"]), _row(params["be3"]),
         _row(params["b4"])],
        axis=0,
    )  # (10, vec_w) f32

    args = (x, w1, w2, w3, w4, vecs)
    grid = (n_tiles,)

    in_specs = [pl.BlockSpec((tile_b, in_size), lambda i: (i, 0))]
    in_specs += [pl.BlockSpec(a.shape, lambda i: (0, 0)) for a in args[1:]]
    out_spec = pl.BlockSpec((tile_b, out_size), lambda i: (i, 0))

    # --- cost estimate for XLA scheduling ---
    flops = 2 * padded_total * (in_size * hidden + hidden * hidden + hidden * h2 + h2 * vec_w)
    param_bytes = sum(int(a.size) * a.dtype.itemsize for a in args[1:])
    bytes_accessed = (padded_total * in_size * 4          # f32 x read
                      + padded_total * out_size * 4       # f32 out write (unpadded!)
                      + param_bytes)
    cost = pl.CostEstimate(
        flops=flops, transcendentals=3 * padded_total, bytes_accessed=bytes_accessed
    )

    # --- VMEM budget: double-buffered x/out tiles, resident (double-buffered) params,
    #     f32 intermediates + bf16 copies, plus compiler scratch headroom. Cap < 64 MiB. ---
    io_bytes = 2 * (tile_b * in_size * 4 + tile_b * out_size * 4)
    act_bytes = tile_b * (hidden + hidden + h2 + vec_w) * 4      # f32 intermediates
    bf16_bytes = tile_b * (in_size + hidden + hidden + h2) * 2   # in-kernel bf16 casts
    vmem_needed = io_bytes + 2 * param_bytes + act_bytes + bf16_bytes + (2 << 20)
    vmem_limit = int(min(max(vmem_needed, 4 << 20), 48 << 20))

    out = pl.pallas_call(
        mlp_kernel,
        grid=grid,
        out_shape=jax.ShapeDtypeStruct((padded_total, out_size), jnp.float32),
        in_specs=in_specs,
        out_specs=out_spec,
        compiler_params=pltpu.CompilerParams(
            dimension_semantics=("parallel",),  # megacore sharding on v7x
            vmem_limit_bytes=vmem_limit,
        ),
        cost_estimate=cost,
    )(*args)

    return out[:batch] if padded_total != batch else out


def init_params(key, input_size, output_size, hidden_size=128):
    """Deterministic synthetic parameter init (PyTorch-like uniform fan-in)."""
    h2 = hidden_size // 2
    dims = [
        (input_size, hidden_size),
        (hidden_size, hidden_size),
        (hidden_size, h2),
        (h2, output_size),
    ]
    params = {}
    keys = jax.random.split(key, 8)
    for i, (fan_in, fan_out) in enumerate(dims, start=1):
        bound = 1.0 / jnp.sqrt(fan_in)
        # weight stored as (in, out) == transpose of PyTorch's (out, in)
        params[f"w{i}"] = jax.random.uniform(
            keys[2 * (i - 1)], (fan_in, fan_out), jnp.float32, -bound, bound
        )
        params[f"b{i}"] = jax.random.uniform(
            keys[2 * (i - 1) + 1], (1, fan_out), jnp.float32, -bound, bound
        )
    # LayerNorm affine params (gamma=1, beta=0 as in nn.LayerNorm init)
    params["g1"] = jnp.ones((1, hidden_size), jnp.float32)
    params["be1"] = jnp.zeros((1, hidden_size), jnp.float32)
    params["g2"] = jnp.ones((1, hidden_size), jnp.float32)
    params["be2"] = jnp.zeros((1, hidden_size), jnp.float32)
    params["g3"] = jnp.ones((1, h2), jnp.float32)
    params["be3"] = jnp.zeros((1, h2), jnp.float32)
    return params


def _reference(x, p, match_bf16=True):
    """Pure-JAX reference. match_bf16=True mimics the kernel's bf16 matmul operands."""
    if x.ndim == 1:
        x = x[None, :]
    cast = (lambda a: a.astype(jnp.bfloat16)) if match_bf16 else (lambda a: a)

    def ln(h, g, b):
        m = jnp.mean(h, axis=-1, keepdims=True)
        c = h - m
        v = jnp.mean(c * c, axis=-1, keepdims=True)
        return c * jax.lax.rsqrt(v + LN_EPS) * g + b

    h = x
    for i in (1, 2, 3):
        h = jnp.dot(cast(h), cast(p[f"w{i}"]), preferred_element_type=jnp.float32)
        h = h + p[f"b{i}"]
        h = jnp.maximum(ln(h, p[f"g{i}"], p[f"be{i}"]), 0.0)
    return jnp.dot(cast(h), cast(p["w4"]), preferred_element_type=jnp.float32) + p["b4"]


if __name__ == "__main__":
    key = jax.random.PRNGKey(0)
    k_x, k_p, k_x2 = jax.random.split(key, 3)

    input_size, output_size, hidden_size = 16, 4, 128
    batch = 2

    x = jax.random.normal(k_x, (batch, input_size), jnp.float32)
    params = init_params(k_p, input_size, output_size, hidden_size)

    # Small-batch check (single grid step, rows padded to 8 sublanes).
    out = jax.block_until_ready(enhanced_network_2d(x, params))
    assert out.shape == (batch, output_size)
    ref_bf16 = _reference(x, params, match_bf16=True)
    ref_f32 = _reference(x, params, match_bf16=False)
    assert jnp.allclose(out, ref_bf16, atol=2e-3, rtol=2e-3), "mismatch vs bf16-matched ref"
    assert jnp.allclose(out, ref_f32, atol=1e-1, rtol=1e-1), "mismatch vs f32 ref"

    # 1-D input path (mirrors x.unsqueeze(0) in the PyTorch forward).
    out1d = jax.block_until_ready(enhanced_network_2d(x[0], params))
    assert out1d.shape == (1, output_size)
    assert jnp.allclose(out1d, ref_bf16[:1], atol=2e-3, rtol=2e-3), "mismatch on 1-D input"

    # Larger, non-multiple batch exercising the grid, row padding and even-tile split.
    x2 = jax.random.normal(k_x2, (300, input_size), jnp.float32)
    out2 = jax.block_until_ready(enhanced_network_2d(x2, params, max_tile_b=128))
    assert out2.shape == (300, output_size)
    ref2 = _reference(x2, params, match_bf16=True)
    assert jnp.allclose(out2, ref2, atol=2e-3, rtol=2e-3), "mismatch vs bf16-matched ref (tiled)"

    print("KERNEL_OK")
</pallas_src>

<mosaic_0001>
module attributes {stable_mosaic.version = 11 : i64} {
  func.func @mlp_kernel(%arg0: i32, %arg1: memref<8x16xf32, #tpu.memory_space<vmem>>, %arg2: memref<16x128xbf16, #tpu.memory_space<vmem>>, %arg3: memref<128x128xbf16, #tpu.memory_space<vmem>>, %arg4: memref<128x64xbf16, #tpu.memory_space<vmem>>, %arg5: memref<64x128xbf16, #tpu.memory_space<vmem>>, %arg6: memref<10x128xf32, #tpu.memory_space<vmem>>, %arg7: memref<8x4xf32, #tpu.memory_space<vmem>>) attributes {dimension_semantics = [#tpu.dimension_semantics<parallel>], iteration_bounds = array<i64: 1>, scalar_prefetch = 0 : i64, scratch_operands = 0 : i64, tpu.core_type = #tpu.core_type<tc>, window_params = [{transform_indices = @transform_0, window_bounds = array<i64: 8, 16>}, {pipeline_mode = #tpu.pipeline_mode<synchronous>, transform_indices = @transform_1, window_bounds = array<i64: 16, 128>}, {pipeline_mode = #tpu.pipeline_mode<synchronous>, transform_indices = @transform_2, window_bounds = array<i64: 128, 128>}, {pipeline_mode = #tpu.pipeline_mode<synchronous>, transform_indices = @transform_3, window_bounds = array<i64: 128, 64>}, {pipeline_mode = #tpu.pipeline_mode<synchronous>, transform_indices = @transform_4, window_bounds = array<i64: 64, 128>}, {pipeline_mode = #tpu.pipeline_mode<synchronous>, transform_indices = @transform_5, window_bounds = array<i64: 10, 128>}, {transform_indices = @transform_6, window_bounds = array<i64: 8, 4>}]} {
    %c0 = arith.constant 0 : index
    %c0_0 = arith.constant 0 : index
    %0 = vector.load %arg6[%c0, %c0_0] : memref<10x128xf32, #tpu.memory_space<vmem>>, vector<10x128xf32>
    %1 = vector.extract_strided_slice %0 {offsets = [0, 0], sizes = [1, 128], strides = [1, 1]} : vector<10x128xf32> to vector<1x128xf32>
    %2 = vector.extract_strided_slice %0 {offsets = [1, 0], sizes = [1, 128], strides = [1, 1]} : vector<10x128xf32> to vector<1x128xf32>
    %3 = vector.extract_strided_slice %0 {offsets = [2, 0], sizes = [1, 128], strides = [1, 1]} : vector<10x128xf32> to vector<1x128xf32>
    %4 = vector.extract_strided_slice %0 {offsets = [3, 0], sizes = [1, 128], strides = [1, 1]} : vector<10x128xf32> to vector<1x128xf32>
    %5 = vector.extract_strided_slice %0 {offsets = [4, 0], sizes = [1, 128], strides = [1, 1]} : vector<10x128xf32> to vector<1x128xf32>
    %6 = vector.extract_strided_slice %0 {offsets = [5, 0], sizes = [1, 128], strides = [1, 1]} : vector<10x128xf32> to vector<1x128xf32>
    %7 = vector.extract_strided_slice %0 {offsets = [6, 0], sizes = [1, 64], strides = [1, 1]} : vector<10x128xf32> to vector<1x64xf32>
    %8 = vector.extract_strided_slice %0 {offsets = [7, 0], sizes = [1, 64], strides = [1, 1]} : vector<10x128xf32> to vector<1x64xf32>
    %9 = vector.extract_strided_slice %0 {offsets = [8, 0], sizes = [1, 64], strides = [1, 1]} : vector<10x128xf32> to vector<1x64xf32>
    %10 = vector.extract_strided_slice %0 {offsets = [9, 0], sizes = [1, 128], strides = [1, 1]} : vector<10x128xf32> to vector<1x128xf32>
    %c0_1 = arith.constant 0 : index
    %c0_2 = arith.constant 0 : index
    %11 = vector.load %arg1[%c0_1, %c0_2] : memref<8x16xf32, #tpu.memory_space<vmem>>, vector<8x16xf32>
    %12 = arith.truncf %11 : vector<8x16xf32> to vector<8x16xbf16>
    %c0_3 = arith.constant 0 : index
    %c0_4 = arith.constant 0 : index
    %13 = vector.load %arg2[%c0_3, %c0_4] : memref<16x128xbf16, #tpu.memory_space<vmem>>, vector<16x128xbf16>
    %cst = arith.constant dense<0.000000e+00> : vector<8x128xf32>
    %14 = tpu.matmul %12, %13, %cst {dimension_numbers = #tpu.dot_dimension_numbers<[1], [0], [0], [1], [0, 0, 1, 1], [], []>} : vector<8x16xbf16>, vector<16x128xbf16>, vector<8x128xf32> -> vector<8x128xf32>
    %15 = vector.broadcast %1 : vector<1x128xf32> to vector<8x128xf32>
    %16 = arith.addf %14, %15 : vector<8x128xf32>
    %cst_5 = arith.constant dense<0.000000e+00> : vector<8xf32>
    %17 = vector.multi_reduction <add>, %16, %cst_5 [1] : vector<8x128xf32> to vector<8xf32>
    %18 = vector.shape_cast %17 : vector<8xf32> to vector<8x1xf32>
    %cst_6 = arith.constant 1.280000e+02 : f32
    %19 = vector.broadcast %cst_6 : f32 to vector<8x1xf32>
    %20 = arith.divf %18, %19 : vector<8x1xf32>
    %21 = vector.broadcast %20 : vector<8x1xf32> to vector<8x128xf32>
    %22 = arith.subf %16, %21 : vector<8x128xf32>
    %23 = arith.mulf %22, %22 : vector<8x128xf32>
    %cst_7 = arith.constant dense<0.000000e+00> : vector<8xf32>
    %24 = vector.multi_reduction <add>, %23, %cst_7 [1] : vector<8x128xf32> to vector<8xf32>
    %25 = vector.shape_cast %24 : vector<8xf32> to vector<8x1xf32>
    %cst_8 = arith.constant 1.280000e+02 : f32
    %26 = vector.broadcast %cst_8 : f32 to vector<8x1xf32>
    %27 = arith.divf %25, %26 : vector<8x1xf32>
    %cst_9 = arith.constant 9.99999974E-6 : f32
    %28 = vector.broadcast %cst_9 : f32 to vector<8x1xf32>
    %29 = arith.addf %27, %28 : vector<8x1xf32>
    %30 = math.rsqrt %29 : vector<8x1xf32>
    %31 = vector.broadcast %30 : vector<8x1xf32> to vector<8x128xf32>
    %32 = arith.mulf %22, %31 : vector<8x128xf32>
    %33 = vector.broadcast %2 : vector<1x128xf32> to vector<8x128xf32>
    %34 = arith.mulf %32, %33 : vector<8x128xf32>
    %35 = vector.broadcast %3 : vector<1x128xf32> to vector<8x128xf32>
    %36 = arith.addf %34, %35 : vector<8x128xf32>
    %cst_10 = arith.constant 0.000000e+00 : f32
    %37 = vector.broadcast %cst_10 : f32 to vector<8x128xf32>
    %38 = arith.maximumf %36, %37 : vector<8x128xf32>
    %39 = arith.truncf %38 : vector<8x128xf32> to vector<8x128xbf16>
    %c0_11 = arith.constant 0 : index
    %c0_12 = arith.constant 0 : index
    %40 = vector.load %arg3[%c0_11, %c0_12] : memref<128x128xbf16, #tpu.memory_space<vmem>>, vector<128x128xbf16>
    %cst_13 = arith.constant dense<0.000000e+00> : vector<8x128xf32>
    %41 = tpu.matmul %39, %40, %cst_13 {dimension_numbers = #tpu.dot_dimension_numbers<[1], [0], [0], [1], [0, 0, 1, 1], [], []>} : vector<8x128xbf16>, vector<128x128xbf16>, vector<8x128xf32> -> vector<8x128xf32>
    %42 = vector.broadcast %4 : vector<1x128xf32> to vector<8x128xf32>
    %43 = arith.addf %41, %42 : vector<8x128xf32>
    %cst_14 = arith.constant dense<0.000000e+00> : vector<8xf32>
    %44 = vector.multi_reduction <add>, %43, %cst_14 [1] : vector<8x128xf32> to vector<8xf32>
    %45 = vector.shape_cast %44 : vector<8xf32> to vector<8x1xf32>
    %cst_15 = arith.constant 1.280000e+02 : f32
    %46 = vector.broadcast %cst_15 : f32 to vector<8x1xf32>
    %47 = arith.divf %45, %46 : vector<8x1xf32>
    %48 = vector.broadcast %47 : vector<8x1xf32> to vector<8x128xf32>
    %49 = arith.subf %43, %48 : vector<8x128xf32>
    %50 = arith.mulf %49, %49 : vector<8x128xf32>
    %cst_16 = arith.constant dense<0.000000e+00> : vector<8xf32>
    %51 = vector.multi_reduction <add>, %50, %cst_16 [1] : vector<8x128xf32> to vector<8xf32>
    %52 = vector.shape_cast %51 : vector<8xf32> to vector<8x1xf32>
    %cst_17 = arith.constant 1.280000e+02 : f32
    %53 = vector.broadcast %cst_17 : f32 to vector<8x1xf32>
    %54 = arith.divf %52, %53 : vector<8x1xf32>
    %cst_18 = arith.constant 9.99999974E-6 : f32
    %55 = vector.broadcast %cst_18 : f32 to vector<8x1xf32>
    %56 = arith.addf %54, %55 : vector<8x1xf32>
    %57 = math.rsqrt %56 : vector<8x1xf32>
    %58 = vector.broadcast %57 : vector<8x1xf32> to vector<8x128xf32>
    %59 = arith.mulf %49, %58 : vector<8x128xf32>
    %60 = vector.broadcast %5 : vector<1x128xf32> to vector<8x128xf32>
    %61 = arith.mulf %59, %60 : vector<8x128xf32>
    %62 = vector.broadcast %6 : vector<1x128xf32> to vector<8x128xf32>
    %63 = arith.addf %61, %62 : vector<8x128xf32>
    %cst_19 = arith.constant 0.000000e+00 : f32
    %64 = vector.broadcast %cst_19 : f32 to vector<8x128xf32>
    %65 = arith.maximumf %63, %64 : vector<8x128xf32>
    %66 = arith.truncf %65 : vector<8x128xf32> to vector<8x128xbf16>
    %c0_20 = arith.constant 0 : index
    %c0_21 = arith.constant 0 : index
    %67 = vector.load %arg4[%c0_20, %c0_21] : memref<128x64xbf16, #tpu.memory_space<vmem>>, vector<128x64xbf16>
    %cst_22 = arith.constant dense<0.000000e+00> : vector<8x64xf32>
    %68 = tpu.matmul %66, %67, %cst_22 {dimension_numbers = #tpu.dot_dimension_numbers<[1], [0], [0], [1], [0, 0, 1, 1], [], []>} : vector<8x128xbf16>, vector<128x64xbf16>, vector<8x64xf32> -> vector<8x64xf32>
    %69 = vector.broadcast %7 : vector<1x64xf32> to vector<8x64xf32>
    %70 = arith.addf %68, %69 : vector<8x64xf32>
    %cst_23 = arith.constant dense<0.000000e+00> : vector<8xf32>
    %71 = vector.multi_reduction <add>, %70, %cst_23 [1] : vector<8x64xf32> to vector<8xf32>
    %72 = vector.shape_cast %71 : vector<8xf32> to vector<8x1xf32>
    %cst_24 = arith.constant 6.400000e+01 : f32
    %73 = vector.broadcast %cst_24 : f32 to vector<8x1xf32>
    %74 = arith.divf %72, %73 : vector<8x1xf32>
    %75 = vector.broadcast %74 : vector<8x1xf32> to vector<8x64xf32>
    %76 = arith.subf %70, %75 : vector<8x64xf32>
    %77 = arith.mulf %76, %76 : vector<8x64xf32>
    %cst_25 = arith.constant dense<0.000000e+00> : vector<8xf32>
    %78 = vector.multi_reduction <add>, %77, %cst_25 [1] : vector<8x64xf32> to vector<8xf32>
    %79 = vector.shape_cast %78 : vector<8xf32> to vector<8x1xf32>
    %cst_26 = arith.constant 6.400000e+01 : f32
    %80 = vector.broadcast %cst_26 : f32 to vector<8x1xf32>
    %81 = arith.divf %79, %80 : vector<8x1xf32>
    %cst_27 = arith.constant 9.99999974E-6 : f32
    %82 = vector.broadcast %cst_27 : f32 to vector<8x1xf32>
    %83 = arith.addf %81, %82 : vector<8x1xf32>
    %84 = math.rsqrt %83 : vector<8x1xf32>
    %85 = vector.broadcast %84 : vector<8x1xf32> to vector<8x64xf32>
    %86 = arith.mulf %76, %85 : vector<8x64xf32>
    %87 = vector.broadcast %8 : vector<1x64xf32> to vector<8x64xf32>
    %88 = arith.mulf %86, %87 : vector<8x64xf32>
    %89 = vector.broadcast %9 : vector<1x64xf32> to vector<8x64xf32>
    %90 = arith.addf %88, %89 : vector<8x64xf32>
    %cst_28 = arith.constant 0.000000e+00 : f32
    %91 = vector.broadcast %cst_28 : f32 to vector<8x64xf32>
    %92 = arith.maximumf %90, %91 : vector<8x64xf32>
    %93 = arith.truncf %92 : vector<8x64xf32> to vector<8x64xbf16>
    %c0_29 = arith.constant 0 : index
    %c0_30 = arith.constant 0 : index
    %94 = vector.load %arg5[%c0_29, %c0_30] : memref<64x128xbf16, #tpu.memory_space<vmem>>, vector<64x128xbf16>
    %cst_31 = arith.constant dense<0.000000e+00> : vector<8x128xf32>
    %95 = tpu.matmul %93, %94, %cst_31 {dimension_numbers = #tpu.dot_dimension_numbers<[1], [0], [0], [1], [0, 0, 1, 1], [], []>} : vector<8x64xbf16>, vector<64x128xbf16>, vector<8x128xf32> -> vector<8x128xf32>
    %96 = vector.broadcast %10 : vector<1x128xf32> to vector<8x128xf32>
    %97 = arith.addf %95, %96 : vector<8x128xf32>
    %98 = vector.extract_strided_slice %97 {offsets = [0, 0], sizes = [8, 4], strides = [1, 1]} : vector<8x128xf32> to vector<8x4xf32>
    %c0_32 = arith.constant 0 : index
    %c0_33 = arith.constant 0 : index
    %99 = vector.load %arg7[%c0_32, %c0_33] : memref<8x4xf32, #tpu.memory_space<vmem>>, vector<8x4xf32>
    tpu.vector_store %arg7[%c0_32, %c0_33], %98 {strides = array<i32>} : memref<8x4xf32, #tpu.memory_space<vmem>>, vector<8x4xf32>,
    return
  }
  func.func @transform_0(%arg0: i32) -> (i32, i32) {
    %c0_i32 = arith.constant 0 : i32
    %c0_i32_0 = arith.constant 0 : i32
    return %arg0, %c0_i32 : i32, i32
  }
  func.func @transform_1(%arg0: i32) -> (i32, i32) {
    %c0_i32 = arith.constant 0 : i32
    %c0_i32_0 = arith.constant 0 : i32
    %c0_i32_1 = arith.constant 0 : i32
    return %c0_i32, %c0_i32_0 : i32, i32
  }
  func.func @transform_2(%arg0: i32) -> (i32, i32) {
    %c0_i32 = arith.constant 0 : i32
    %c0_i32_0 = arith.constant 0 : i32
    %c0_i32_1 = arith.constant 0 : i32
    return %c0_i32, %c0_i32_0 : i32, i32
  }
  func.func @transform_3(%arg0: i32) -> (i32, i32) {
    %c0_i32 = arith.constant 0 : i32
    %c0_i32_0 = arith.constant 0 : i32
    %c0_i32_1 = arith.constant 0 : i32
    return %c0_i32, %c0_i32_0 : i32, i32
  }
  func.func @transform_4(%arg0: i32) -> (i32, i32) {
    %c0_i32 = arith.constant 0 : i32
    %c0_i32_0 = arith.constant 0 : i32
    %c0_i32_1 = arith.constant 0 : i32
    return %c0_i32, %c0_i32_0 : i32, i32
  }
  func.func @transform_5(%arg0: i32) -> (i32, i32) {
    %c0_i32 = arith.constant 0 : i32
    %c0_i32_0 = arith.constant 0 : i32
    %c0_i32_1 = arith.constant 0 : i32
    return %c0_i32, %c0_i32_0 : i32, i32
  }
  func.func @transform_6(%arg0: i32) -> (i32, i32) {
    %c0_i32 = arith.constant 0 : i32
    %c0_i32_0 = arith.constant 0 : i32
    return %arg0, %c0_i32 : i32, i32
  }
}

</mosaic_0001>

<llo_original>
// kernel: tpu_custom_call.1
$region0: #{tpu_custom_call.1}
  #allocation0 [shape = 'u32[]', space=smem, size = 0x4, offset = 0x4, fixed_abs, tag = 'smem constant byte address 0x4 - core index']
  #allocation1 [shape = 'u32[144,128]{1,0:T(1,128)}', space=vmem, size = 0x12000, scoped, tag = 'internal scratch']
  %s0 = inlined_call_operand.hbm [shape: f32[8,16], index: 0, kind: input, shape index: {}]
  %s1 = inlined_call_operand.hbm [shape: bf16[16,128], index: 1, kind: input, shape index: {}]
  %s2 = inlined_call_operand.vmem [shape: bf16[128,128], index: 2, kind: input, shape index: {}]
  %s3 = inlined_call_operand.vmem [shape: bf16[128,64], index: 3, kind: input, shape index: {}]
  %s4 = inlined_call_operand.vmem [shape: bf16[64,128], index: 4, kind: input, shape index: {}]
  %s5 = inlined_call_operand.vmem [shape: f32[10,128], index: 5, kind: input, shape index: {}]
  %s6 = inlined_call_operand.vmem [shape: f32[8,4], index: 6, kind: output, shape index: {}]
  %s7 = sld [smem:[#allocation0]]
  $region42: #{tpu_custom_call.1} parent=0
    _
  %s9 = ssub.s32 1, %s7
  %s10 = scalar_select 0, %s9, %s7
  $region1: #{tpu_custom_call.1} parent=0
    #allocation2 [shape = 'u8[4096]{0}', space=vmem, size = 0x1000, scoped, tag = 'input window, operand 0, single buffered']
    #allocation3 [shape = 's32[1]{0}', space=sflag, size = 0x4, scoped, tag = 'scoped memory for tpu_custom_call.1']
    #allocation4 [shape = 'u8[4096]{0}', space=vmem, size = 0x1000, scoped, tag = 'input window, operand 1, single buffered']
    #allocation5 [shape = 's32[1]{0}', space=sflag, size = 0x4, scoped, tag = 'scoped memory for tpu_custom_call.1']
    %11 = vsyncpa [#allocation3], 0
    %12 = vsyncpa [#allocation5], 0
    // Predicated region
    $region2: #{tpu_custom_call.1} parent=1 // pred_check
      _
    $region3: #{tpu_custom_call.1} parent=1 // pred_check_branch
      %14 = sbr.rel (0) target = $region5
    $region4: #{tpu_custom_call.1} parent=1 // pred_region
      %s16 = ssub.s32 128, 128
      %17 = vsyncadd [#allocation3], %s16
      %s19 = sshll.u32 [#allocation2], 4
      %s20 = int_to_ptr.vmem [resolvable:$true] %s19
      %22 = dma.hbm_to_vmem [thread:$0]  %s0, 128, %s20, [#allocation3]
    $region5: #{tpu_custom_call.1} parent=1 // pred_fallthru
      _
    // Predicated region
    $region6: #{tpu_custom_call.1} parent=1 // pred_check
      _
    $region7: #{tpu_custom_call.1} parent=1 // pred_check_branch
      %24 = sbr.rel (0) target = $region9
    $region8: #{tpu_custom_call.1} parent=1 // pred_region
      %s26 = ssub.s32 128, 128
      %27 = vsyncadd [#allocation5], %s26
      %s28 = sshll.u32 [#allocation4], 4
      %s29 = int_to_ptr.vmem [resolvable:$true] %s28
      %34 = dma.hbm_to_vmem [thread:$0]  %s1, 128, %s29, [#allocation5], 64, 64, 4
    $region9: #{tpu_custom_call.1} parent=1 // pred_fallthru
      _
    // Predicated region
    $region10: #{tpu_custom_call.1} parent=1 // pred_check
      _
    $region11: #{tpu_custom_call.1} parent=1 // pred_check_branch
      %36 = sbr.rel (0) target = $region13
    $region12: #{tpu_custom_call.1} parent=1 // pred_region
      _
    $region13: #{tpu_custom_call.1} parent=1 // pred_fallthru
      _
    // Predicated region
    $region14: #{tpu_custom_call.1} parent=1 // pred_check
      _
    $region15: #{tpu_custom_call.1} parent=1 // pred_check_branch
      %38 = sbr.rel (0) target = $region17
    $region16: #{tpu_custom_call.1} parent=1 // pred_region
      _
    $region17: #{tpu_custom_call.1} parent=1 // pred_fallthru
      _
    // Predicated region
    $region18: #{tpu_custom_call.1} parent=1 // pred_check
      _
    $region19: #{tpu_custom_call.1} parent=1 // pred_check_branch
      %40 = sbr.rel (0) target = $region21
    $region20: #{tpu_custom_call.1} parent=1 // pred_region
      _
    $region21: #{tpu_custom_call.1} parent=1 // pred_fallthru
      _
    // Predicated region
    $region22: #{tpu_custom_call.1} parent=1 // pred_check
      _
    $region23: #{tpu_custom_call.1} parent=1 // pred_check_branch
      %42 = sbr.rel (0) target = $region25
    $region24: #{tpu_custom_call.1} parent=1 // pred_region
      _
    $region25: #{tpu_custom_call.1} parent=1 // pred_fallthru
      _
    // Predicated region
    $region26: #{tpu_custom_call.1} parent=1 // pred_check
      _
    $region27: #{tpu_custom_call.1} parent=1 // pred_check_branch
      %44 = sbr.rel (0) target = $region29
    $region28: #{tpu_custom_call.1} parent=1 // pred_region
      %45 = dma.done [#allocation3], 128
    $region29: #{tpu_custom_call.1} parent=1 // pred_fallthru
      _
    // Predicated region
    $region30: #{tpu_custom_call.1} parent=1 // pred_check
      _
    $region31: #{tpu_custom_call.1} parent=1 // pred_check_branch
      %47 = sbr.rel (0) target = $region33
    $region32: #{tpu_custom_call.1} parent=1 // pred_region
      %48 = dma.done [#allocation5], 128
    $region33: #{tpu_custom_call.1} parent=1 // pred_fallthru
      _
    %v50 = vld [vmem:[%s5] sm:$0xff]
    %v51 = vld [vmem:[%s5 + $0x8] sm:$0x3]
    %v52 = vld [vmem:[#allocation2] sm:$0xff]
    %v53 = vpack.c.bf16 %v52, %v52
    %v54 = vld [vmem:[#allocation4] sm:$0xf]
    %v55 = vld [vmem:[#allocation4 + $0x4] sm:$0xf]
    %v56 = vlaneseq
    %v57 = vshrl.u32 %v56, 7
    %v58 = vsub.s32 0, %v57
    %v59 = vrot.slane %v50, %v58
    %v62 = vunpack.c.l.b16 %v54
    %v63 = vunpack.c.l.b16 %v55
    %v64 = vpack.c.b16 %v63, %v62
    %vm66 = vcmask 130048
    %v68 = vsel %vm66, %v53, 0
    %70 = vmatprep.subr.bf16.mxu0 0
    %71 = vmatpush1.bf16.msra.mxu0 %v64
    %72 = vmatprep.subr.bf16.mxu0 0
    %73 = vmatpush1.bf16.msra.mxu0 0
    %74 = vmatprep.subr.bf16.mxu0 0
    %75 = vmatpush1.bf16.msra.mxu0 0
    %76 = vmatprep.subr.bf16.mxu0 0
    %77 = vmatpush1.bf16.msra.mxu0 0
    %78 = vmatprep.subr.bf16.mxu0 0
    %79 = vmatpush1.bf16.msra.mxu0 0
    %80 = vmatprep.subr.bf16.mxu0 0
    %81 = vmatpush1.bf16.msra.mxu0 0
    %82 = vmatprep.subr.bf16.mxu0 0
    %83 = vmatpush1.bf16.msra.mxu0 0
    %84 = vmatprep.subr.bf16.mxu0 0
    %85 = vmatpush1.bf16.msra.mxu0 0
    %86 = vmatprep.subr.bf16.mxu0 0
    %87 = vmatpush1.bf16.msra.mxu0 0
    %88 = vmatprep.subr.bf16.mxu0 0
    %89 = vmatpush1.bf16.msra.mxu0 0
    %90 = vmatprep.subr.bf16.mxu0 0
    %91 = vmatpush1.bf16.msra.mxu0 0
    %92 = vmatprep.subr.bf16.mxu0 0
    %93 = vmatpush1.bf16.msra.mxu0 0
    %94 = vmatprep.subr.bf16.mxu0 0
    %95 = vmatpush1.bf16.msra.mxu0 0
    %96 = vmatprep.subr.bf16.mxu0 0
    %97 = vmatpush1.bf16.msra.mxu0 0
    %98 = vmatprep.subr.bf16.mxu0 0
    %99 = vmatpush1.bf16.msra.mxu0 0
    %100 = vmatprep.subr.bf16.mxu0 0
    %101 = vmatpush1.bf16.msra.mxu0 0
    %102 = vmatprep.mubr.bf16.mxu0 0
    %103 = vmatmul.mubr.bf16.gmra.mrb[0].mxu0 %v68
    %v104 = vpop.f32.mrb[0].mxu0
    %v105 = vadd.f32 %v59, %v104
    %v106 = vpop.f32.mrb[0].mxu0
    %v107 = vpop.f32.mrb[0].mxu0
    %v108 = vpop.f32.mrb[0].mxu0
    %109 = vdwg.mxu0
    %110 = vadd.xlane.f32.xlu0 %v105
    %v111 = vpop.xlane.xlu0 %110
    %v112 = vrcp.pop 128.0
    %v113 = vmul.f32 %v111, %v112
    %v114 = vsub.f32 %v105, %v113
    %v115 = vmul.f32 %v114, %v114
    %116 = vadd.xlane.f32.xlu0 %v115
    %v117 = vpop.xlane.xlu0 %116
    %v118 = vmul.f32 %v117, %v112
    %v119 = vadd.f32 %v118, 1e-05
    %v120 = vrsqrt.pop %v119
    %v121 = vmul.f32 %v114, %v120
    %v122 = vlaneseq
    %v123 = vshrl.u32 %v122, 7
    %v124 = vsub.s32 1, %v123
    %v125 = vrot.slane %v50, %v124
    %v126 = vmul.f32 %v121, %v125
    %v127 = vlaneseq
    %v128 = vshrl.u32 %v127, 7
    %v129 = vsub.s32 2, %v128
    %v130 = vrot.slane %v50, %v129
    %v131 = vadd.f32 %v126, %v130
    %v132 = vmax.f32 %v131, 0.0
    %v133 = vpack.c.bf16 %v132, %v132
    %v134 = vld [vmem:[%s2] sm:$0xf]
    %v135 = vld [vmem:[%s2 + $0x4] sm:$0xf]
    %v136 = vld [vmem:[%s2 + $0x8] sm:$0xf]
    %v137 = vld [vmem:[%s2 + $0xc] sm:$0xf]
    %v138 = vld [vmem:[%s2 + $0x10] sm:$0xf]
    %v139 = vld [vmem:[%s2 + $0x14] sm:$0xf]
    %v140 = vld [vmem:[%s2 + $0x18] sm:$0xf]
    %v141 = vld [vmem:[%s2 + $0x1c] sm:$0xf]
    %v142 = vld [vmem:[%s2 + $0x20] sm:$0xf]
    %v143 = vld [vmem:[%s2 + $0x24] sm:$0xf]
    %v144 = vld [vmem:[%s2 + $0x28] sm:$0xf]
    %v145 = vld [vmem:[%s2 + $0x2c] sm:$0xf]
    %v146 = vld [vmem:[%s2 + $0x30] sm:$0xf]
    %v147 = vld [vmem:[%s2 + $0x34] sm:$0xf]
    %v148 = vld [vmem:[%s2 + $0x38] sm:$0xf]
    %v149 = vld [vmem:[%s2 + $0x3c] sm:$0xf]
    %v150 = vlaneseq
    %v151 = vshrl.u32 %v150, 7
    %v152 = vsub.s32 3, %v151
    %v153 = vrot.slane %v50, %v152
    %v170 = vunpack.c.l.b16 %v134
    %v171 = vunpack.c.l.b16 %v135
    %v172 = vunpack.c.l.b16 %v136
    %v173 = vunpack.c.l.b16 %v137
    %v174 = vunpack.c.l.b16 %v138
    %v175 = vunpack.c.l.b16 %v139
    %v176 = vunpack.c.l.b16 %v140
    %v177 = vunpack.c.l.b16 %v141
    %v178 = vunpack.c.l.b16 %v142
    %v179 = vunpack.c.l.b16 %v143
    %v180 = vunpack.c.l.b16 %v144
    %v181 = vunpack.c.l.b16 %v145
    %v182 = vunpack.c.l.b16 %v146
    %v183 = vunpack.c.l.b16 %v147
    %v184 = vunpack.c.l.b16 %v148
    %v185 = vunpack.c.l.b16 %v149
    %v186 = vpack.c.b16 %v171, %v170
    %v187 = vpack.c.b16 %v173, %v172
    %v188 = vpack.c.b16 %v175, %v174
    %v189 = vpack.c.b16 %v177, %v176
    %v190 = vpack.c.b16 %v179, %v178
    %v191 = vpack.c.b16 %v181, %v180
    %v192 = vpack.c.b16 %v183, %v182
    %v193 = vpack.c.b16 %v185, %v184
    %202 = vmatprep.subr.bf16.mxu0 0
    %203 = vmatpush1.bf16.msra.mxu0 %v186
    %204 = vmatprep.subr.bf16.mxu0 0
    %205 = vmatpush1.bf16.msra.mxu0 %v187
    %206 = vmatprep.subr.bf16.mxu0 0
    %207 = vmatpush1.bf16.msra.mxu0 %v188
    %208 = vmatprep.subr.bf16.mxu0 0
    %209 = vmatpush1.bf16.msra.mxu0 %v189
    %210 = vmatprep.subr.bf16.mxu0 0
    %211 = vmatpush1.bf16.msra.mxu0 %v190
    %212 = vmatprep.subr.bf16.mxu0 0
    %213 = vmatpush1.bf16.msra.mxu0 %v191
    %214 = vmatprep.subr.bf16.mxu0 0
    %215 = vmatpush1.bf16.msra.mxu0 %v192
    %216 = vmatprep.subr.bf16.mxu0 0
    %217 = vmatpush1.bf16.msra.mxu0 %v193
    %218 = vmatprep.subr.bf16.mxu0 0
    %219 = vmatpush1.bf16.msra.mxu0 0
    %220 = vmatprep.subr.bf16.mxu0 0
    %221 = vmatpush1.bf16.msra.mxu0 0
    %222 = vmatprep.subr.bf16.mxu0 0
    %223 = vmatpush1.bf16.msra.mxu0 0
    %224 = vmatprep.subr.bf16.mxu0 0
    %225 = vmatpush1.bf16.msra.mxu0 0
    %226 = vmatprep.subr.bf16.mxu0 0
    %227 = vmatpush1.bf16.msra.mxu0 0
    %228 = vmatprep.subr.bf16.mxu0 0
    %229 = vmatpush1.bf16.msra.mxu0 0
    %230 = vmatprep.subr.bf16.mxu0 0
    %231 = vmatpush1.bf16.msra.mxu0 0
    %232 = vmatprep.subr.bf16.mxu0 0
    %233 = vmatpush1.bf16.msra.mxu0 0
    %234 = vmatprep.mubr.bf16.mxu0 0
    %235 = vmatmul.mubr.bf16.gmra.mrb[0].mxu0 %v133
    %v236 = vpop.f32.mrb[0].mxu0
    %v237 = vadd.f32 %v153, %v236
    %v238 = vpop.f32.mrb[0].mxu0
    %v239 = vpop.f32.mrb[0].mxu0
    %v240 = vpop.f32.mrb[0].mxu0
    %241 = vdwg.mxu0
    %242 = vadd.xlane.f32.xlu0 %v237
    %v243 = vpop.xlane.xlu0 %242
    %v244 = vmul.f32 %v243, %v112
    %v245 = vsub.f32 %v237, %v244
    %v246 = vmul.f32 %v245, %v245
    %247 = vadd.xlane.f32.xlu0 %v246
    %v248 = vpop.xlane.xlu0 %247
    %v249 = vmul.f32 %v248, %v112
    %v250 = vadd.f32 %v249, 1e-05
    %v251 = vrsqrt.pop %v250
    %v252 = vmul.f32 %v245, %v251
    %v253 = vlaneseq
    %v254 = vshrl.u32 %v253, 7
    %v255 = vsub.s32 4, %v254
    %v256 = vrot.slane %v50, %v255
    %v257 = vmul.f32 %v252, %v256
    %v258 = vlaneseq
    %v259 = vshrl.u32 %v258, 7
    %v260 = vsub.s32 5, %v259
    %v261 = vrot.slane %v50, %v260
    %v262 = vadd.f32 %v257, %v261
    %v263 = vmax.f32 %v262, 0.0
    %v264 = vpack.c.bf16 %v263, %v263
    %v265 = vld [vmem:[%s3] sm:$0xf]
    %v266 = vld [vmem:[%s3 + $0x4] sm:$0xf]
    %v267 = vld [vmem:[%s3 + $0x8] sm:$0xf]
    %v268 = vld [vmem:[%s3 + $0xc] sm:$0xf]
    %v269 = vld [vmem:[%s3 + $0x10] sm:$0xf]
    %v270 = vld [vmem:[%s3 + $0x14] sm:$0xf]
    %v271 = vld [vmem:[%s3 + $0x18] sm:$0xf]
    %v272 = vld [vmem:[%s3 + $0x1c] sm:$0xf]
    %v273 = vld [vmem:[%s3 + $0x20] sm:$0xf]
    %v274 = vld [vmem:[%s3 + $0x24] sm:$0xf]
    %v275 = vld [vmem:[%s3 + $0x28] sm:$0xf]
    %v276 = vld [vmem:[%s3 + $0x2c] sm:$0xf]
    %v277 = vld [vmem:[%s3 + $0x30] sm:$0xf]
    %v278 = vld [vmem:[%s3 + $0x34] sm:$0xf]
    %v279 = vld [vmem:[%s3 + $0x38] sm:$0xf]
    %v280 = vld [vmem:[%s3 + $0x3c] sm:$0xf]
    %v281 = vlaneseq
    %v282 = vshrl.u32 %v281, 7
    %v283 = vsub.s32 6, %v282
    %v284 = vrot.slane %v50, %v283
    %v301 = vunpack.c.l.b16 %v265
    %v302 = vunpack.c.l.b16 %v266
    %v303 = vunpack.c.l.b16 %v267
    %v304 = vunpack.c.l.b16 %v268
    %v305 = vunpack.c.l.b16 %v269
    %v306 = vunpack.c.l.b16 %v270
    %v307 = vunpack.c.l.b16 %v271
    %v308 = vunpack.c.l.b16 %v272
    %v309 = vunpack.c.l.b16 %v273
    %v310 = vunpack.c.l.b16 %v274
    %v311 = vunpack.c.l.b16 %v275
    %v312 = vunpack.c.l.b16 %v276
    %v313 = vunpack.c.l.b16 %v277
    %v314 = vunpack.c.l.b16 %v278
    %v315 = vunpack.c.l.b16 %v279
    %v316 = vunpack.c.l.b16 %v280
    %v317 = vpack.c.b16 %v302, %v301
    %v318 = vpack.c.b16 %v304, %v303
    %v319 = vpack.c.b16 %v306, %v305
    %v320 = vpack.c.b16 %v308, %v307
    %v321 = vpack.c.b16 %v310, %v309
    %v322 = vpack.c.b16 %v312, %v311
    %v323 = vpack.c.b16 %v314, %v313
    %v324 = vpack.c.b16 %v316, %v315
    %333 = vmatprep.subr.bf16.mxu0 0
    %334 = vmatpush1.bf16.msra.mxu0 %v317
    %335 = vmatprep.subr.bf16.mxu0 0
    %336 = vmatpush1.bf16.msra.mxu0 %v318
    %337 = vmatprep.subr.bf16.mxu0 0
    %338 = vmatpush1.bf16.msra.mxu0 %v319
    %339 = vmatprep.subr.bf16.mxu0 0
    %340 = vmatpush1.bf16.msra.mxu0 %v320
    %341 = vmatprep.subr.bf16.mxu0 0
    %342 = vmatpush1.bf16.msra.mxu0 %v321
    %343 = vmatprep.subr.bf16.mxu0 0
    %344 = vmatpush1.bf16.msra.mxu0 %v322
    %345 = vmatprep.subr.bf16.mxu0 0
    %346 = vmatpush1.bf16.msra.mxu0 %v323
    %347 = vmatprep.subr.bf16.mxu0 0
    %348 = vmatpush1.bf16.msra.mxu0 %v324
    %349 = vmatprep.subr.bf16.mxu0 0
    %350 = vmatpush1.bf16.msra.mxu0 0
    %351 = vmatprep.subr.bf16.mxu0 0
    %352 = vmatpush1.bf16.msra.mxu0 0
    %353 = vmatprep.subr.bf16.mxu0 0
    %354 = vmatpush1.bf16.msra.mxu0 0
    %355 = vmatprep.subr.bf16.mxu0 0
    %356 = vmatpush1.bf16.msra.mxu0 0
    %357 = vmatprep.subr.bf16.mxu0 0
    %358 = vmatpush1.bf16.msra.mxu0 0
    %359 = vmatprep.subr.bf16.mxu0 0
    %360 = vmatpush1.bf16.msra.mxu0 0
    %361 = vmatprep.subr.bf16.mxu0 0
    %362 = vmatpush1.bf16.msra.mxu0 0
    %363 = vmatprep.subr.bf16.mxu0 0
    %364 = vmatpush1.bf16.msra.mxu0 0
    %365 = vmatprep.mubr.bf16.mxu0 0
    %366 = vmatmul.mubr.bf16.gmra.mrb[0].mxu0 %v264
    %v367 = vpop.f32.mrb[0].mxu0
    %v368 = vadd.f32 %v284, %v367
    %v369 = vpop.f32.mrb[0].mxu0
    %v370 = vpop.f32.mrb[0].mxu0
    %v371 = vpop.f32.mrb[0].mxu0
    %372 = vdwg.mxu0
    %vm373 = vcmask 523264
    %v374 = vsel %vm373, %v368, 0.0
    %375 = vadd.xlane.f32.xlu0 %v374
    %v376 = vpop.xlane.xlu0 %375
    %v377 = vrcp.pop 64.0
    %v378 = vmul.f32 %v376, %v377
    %v379 = vsub.f32 %v368, %v378
    %v380 = vmul.f32 %v379, %v379
    %v381 = vsel %vm373, %v380, 0.0
    %382 = vadd.xlane.f32.xlu0 %v381
    %v383 = vpop.xlane.xlu0 %382
    %v384 = vmul.f32 %v383, %v377
    %v385 = vadd.f32 %v384, 1e-05
    %v386 = vrsqrt.pop %v385
    %v387 = vmul.f32 %v379, %v386
    %v388 = vlaneseq
    %v389 = vshrl.u32 %v388, 7
    %v390 = vsub.s32 7, %v389
    %v391 = vrot.slane %v50, %v390
    %v392 = vmul.f32 %v387, %v391
    %v393 = vlaneseq
    %v394 = vshrl.u32 %v393, 7
    %v395 = vsub.s32 0, %v394
    %v396 = vrot.slane %v51, %v395
    %v397 = vadd.f32 %v392, %v396
    %v398 = vmax.f32 %v397, 0.0
    %v399 = vpack.c.bf16 %v398, %v398
    %v400 = vld [vmem:[%s4] sm:$0xf]
    %v401 = vld [vmem:[%s4 + $0x4] sm:$0xf]
    %v402 = vld [vmem:[%s4 + $0x8] sm:$0xf]
    %v403 = vld [vmem:[%s4 + $0xc] sm:$0xf]
    %v404 = vld [vmem:[%s4 + $0x10] sm:$0xf]
    %v405 = vld [vmem:[%s4 + $0x14] sm:$0xf]
    %v406 = vld [vmem:[%s4 + $0x18] sm:$0xf]
    %v407 = vld [vmem:[%s4 + $0x1c] sm:$0xf]
    %v408 = vlaneseq
    %v409 = vshrl.u32 %v408, 7
    %v410 = vsub.s32 1, %v409
    %v411 = vrot.slane %v51, %v410
    %v420 = vunpack.c.l.b16 %v400
    %v421 = vunpack.c.l.b16 %v401
    %v422 = vunpack.c.l.b16 %v402
    %v423 = vunpack.c.l.b16 %v403
    %v424 = vunpack.c.l.b16 %v404
    %v425 = vunpack.c.l.b16 %v405
    %v426 = vunpack.c.l.b16 %v406
    %v427 = vunpack.c.l.b16 %v407
    %v428 = vpack.c.b16 %v421, %v420
    %v429 = vpack.c.b16 %v423, %v422
    %v430 = vpack.c.b16 %v425, %v424
    %v431 = vpack.c.b16 %v427, %v426
    %v437 = vsel %vm373, %v399, 0
    %439 = vmatprep.subr.bf16.mxu0 0
    %440 = vmatpush1.bf16.msra.mxu0 %v428
    %441 = vmatprep.subr.bf16.mxu0 0
    %442 = vmatpush1.bf16.msra.mxu0 %v429
    %443 = vmatprep.subr.bf16.mxu0 0
    %444 = vmatpush1.bf16.msra.mxu0 %v430
    %445 = vmatprep.subr.bf16.mxu0 0
    %446 = vmatpush1.bf16.msra.mxu0 %v431
    %447 = vmatprep.subr.bf16.mxu0 0
    %448 = vmatpush1.bf16.msra.mxu0 0
    %449 = vmatprep.subr.bf16.mxu0 0
    %450 = vmatpush1.bf16.msra.mxu0 0
    %451 = vmatprep.subr.bf16.mxu0 0
    %452 = vmatpush1.bf16.msra.mxu0 0
    %453 = vmatprep.subr.bf16.mxu0 0
    %454 = vmatpush1.bf16.msra.mxu0 0
    %455 = vmatprep.subr.bf16.mxu0 0
    %456 = vmatpush1.bf16.msra.mxu0 0
    %457 = vmatprep.subr.bf16.mxu0 0
    %458 = vmatpush1.bf16.msra.mxu0 0
    %459 = vmatprep.subr.bf16.mxu0 0
    %460 = vmatpush1.bf16.msra.mxu0 0
    %461 = vmatprep.subr.bf16.mxu0 0
    %462 = vmatpush1.bf16.msra.mxu0 0
    %463 = vmatprep.subr.bf16.mxu0 0
    %464 = vmatpush1.bf16.msra.mxu0 0
    %465 = vmatprep.subr.bf16.mxu0 0
    %466 = vmatpush1.bf16.msra.mxu0 0
    %467 = vmatprep.subr.bf16.mxu0 0
    %468 = vmatpush1.bf16.msra.mxu0 0
    %469 = vmatprep.subr.bf16.mxu0 0
    %470 = vmatpush1.bf16.msra.mxu0 0
    %471 = vmatprep.mubr.bf16.mxu0 0
    %472 = vmatmul.mubr.bf16.gmra.mrb[0].mxu0 %v437
    %v473 = vpop.f32.mrb[0].mxu0
    %v474 = vadd.f32 %v411, %v473
    %v475 = vpop.f32.mrb[0].mxu0
    %v476 = vpop.f32.mrb[0].mxu0
    %v477 = vpop.f32.mrb[0].mxu0
    %478 = vdwg.mxu0
    %vm479 = vcmask 31744
    %480 = vst.msk [vmem:[%s6] sm:$0xff] %vm479, %v474
    // Predicated region
    $region34: #{tpu_custom_call.1} parent=1 // pred_check
      _
    $region35: #{tpu_custom_call.1} parent=1 // pred_check_branch
      %482 = sbr.rel (0) target = $region37
    $region36: #{tpu_custom_call.1} parent=1 // pred_region
      _
    $region37: #{tpu_custom_call.1} parent=1 // pred_fallthru
      _
    // Predicated region
    $region38: #{tpu_custom_call.1} parent=1 // pred_check
      _
    $region39: #{tpu_custom_call.1} parent=1 // pred_check_branch
      %484 = sbr.rel (0) target = $region41
    $region40: #{tpu_custom_call.1} parent=1 // pred_region
      _
    $region41: #{tpu_custom_call.1} parent=1 // pred_fallthru
      _
    %485 = vsyncpa [#allocation3], 1
    %486 = vsyncpa [#allocation5], 1

</llo_original>
